<compile_context>
chip_gen: v7x
topology: tpu7x:2x2x1
jax: 0.10.0
libtpu: 0.0.40
codegen_flags: <defaults>
</compile_context>

<pallas_src>
import functools

import jax
import jax.numpy as jnp
from jax.experimental import pallas as pl
from jax.experimental.pallas import tpu as pltpu

_NEG_INF = -1e30  # bias for padded action columns -> exp() == 0 in softmax


def _round_up(x, m):
    return (x + m - 1) // m * m


def _default_exp_dtype(matmul_dtype):
    """bf16 exp only where the EUP is bf16-capable (v6e/v7x) and the matmul
    path is already bf16; otherwise stay in f32 (exact, and right for v5e)."""
    if matmul_dtype != jnp.bfloat16:
        return jnp.float32
    try:
        kind = jax.devices()[0].device_kind.lower()
    except Exception:
        return jnp.float32
    return jnp.bfloat16 if ("v6" in kind or "v7" in kind) else jnp.float32


def actor_mlp_kernel(x_ref, w1_ref, b1_ref, w2_ref, b2_ref, w3_ref, b3_ref,
                     out_ref, *, exp_dtype):
    """Full ActorNetwork forward for one batch tile.

    fc1 runs in f32 (tiny K, latency-bound); fc2/fc3 run in the weights' dtype
    (bf16 by default) with f32 accumulation.  The softmax epilogue is f32
    except the exp, which uses `exp_dtype`.  Only the real action columns are
    stored to the output (out_ref's last dim == n_actions).
    """
    x = x_ref[...]  # (tile, D) f32

    # fc1 + ReLU (f32 operands: K=D is tiny, the MXU pass is latency-bound).
    h1 = jnp.dot(x, w1_ref[...], preferred_element_type=jnp.float32)
    h1 = jnp.maximum(h1 + b1_ref[...], 0.0)

    # fc2 + ReLU (bf16 operands by default, f32 accumulation).
    h2 = jnp.dot(h1.astype(w2_ref.dtype), w2_ref[...],
                 preferred_element_type=jnp.float32)
    h2 = jnp.maximum(h2 + b2_ref[...], 0.0)

    # fc3 logits over the lane-padded (128) action dim; padded columns carry a
    # -1e30 bias so their exp is exactly 0 below.
    logits = jnp.dot(h2.astype(w3_ref.dtype), w3_ref[...],
                     preferred_element_type=jnp.float32)
    logits = logits + b3_ref[...]

    # Numerically stable softmax; exp optionally in bf16, divide on the EUP.
    m = jnp.max(logits, axis=-1, keepdims=True)
    e = jnp.exp((logits - m).astype(exp_dtype)).astype(jnp.float32)
    denom = jnp.sum(e, axis=-1, keepdims=True)
    probs = e * pl.reciprocal(denom, approx=True)

    # Narrow store: only the real n_actions columns go to HBM.
    out_ref[...] = probs[:, :out_ref.shape[-1]].astype(out_ref.dtype)


def prepare_params(params, *, matmul_dtype=jnp.bfloat16):
    """One-time weight prep (hoisted out of the per-step forward call).

    Casts fc2/fc3 weights to `matmul_dtype`, lane-pads the action dim of
    w3/b3 up to 128 (padded bias = -1e30), keeps fc1 + all biases in f32.
    """
    A = params["w3"].shape[1]
    Ap = _round_up(A, 128)
    return {
        "w1": params["w1"].astype(jnp.float32),
        "b1": params["b1"].astype(jnp.float32),
        "w2": params["w2"].astype(matmul_dtype),
        "b2": params["b2"].astype(jnp.float32),
        "w3": jnp.pad(params["w3"], ((0, 0), (0, Ap - A))).astype(matmul_dtype),
        "b3": jnp.pad(params["b3"], ((0, 0), (0, Ap - A)),
                      constant_values=_NEG_INF).astype(jnp.float32),
        "n_actions": A,  # static python int
    }


def actor_forward(state, prepared, *, batch_tile=1024, min_grid_steps=2):
    """Runs the ActorNetwork forward pass as a single Pallas TPU kernel.

    Args:
      state: (B, D) float32 observations.
      prepared: output of prepare_params().
      batch_tile: target rows per grid step (rounded to the sublane multiple
        and clipped to the padded batch).
      min_grid_steps: for large batches, clamp the tile so the grid has at
        least this many steps (v7x megacore sharding).

    Returns:
      (B, A) float32 action probabilities (the Categorical's `probs`).
    """
    B, D = state.shape
    A = prepared["n_actions"]
    matmul_dtype = prepared["w2"].dtype
    exp_dtype = _default_exp_dtype(matmul_dtype)

    # Sublane granularity: 8 rows for f32, 16 for bf16 packing of h1/h2.
    sublane = 16 if matmul_dtype == jnp.bfloat16 else 8
    tile = max(sublane,
               min(_round_up(batch_tile, sublane), _round_up(B, sublane)))
    # v7x megacore: when the batch is big enough, keep >= min_grid_steps grid
    # steps so the "parallel" axis can shard across both TensorCores.
    if B >= 256:
        tile = min(tile, _round_up(pl.cdiv(B, min_grid_steps), sublane))
    Bp = _round_up(B, tile)

    state_p = state if Bp == B else jnp.pad(state, ((0, Bp - B), (0, 0)))

    grid = (Bp // tile,)

    # Weights/biases live fully in VMEM; their block index never changes, so
    # the pipeline only DMAs them once (no per-step weight traffic).
    full = lambda shape: pl.BlockSpec(shape, lambda i: (0,) * len(shape))

    out = pl.pallas_call(
        functools.partial(actor_mlp_kernel, exp_dtype=exp_dtype),
        out_shape=jax.ShapeDtypeStruct((Bp, A), jnp.float32),
        grid_spec=pltpu.PrefetchScalarGridSpec(
            num_scalar_prefetch=0,
            grid=grid,
            in_specs=[
                pl.BlockSpec((tile, D), lambda i: (i, 0)),   # state tile
                full(prepared["w1"].shape),   # w1 (D, F1), f32
                full(prepared["b1"].shape),   # b1 (1, F1)
                full(prepared["w2"].shape),   # w2 (F1, F2), bf16
                full(prepared["b2"].shape),   # b2 (1, F2)
                full(prepared["w3"].shape),   # w3 (F2, Ap), lane-padded
                full(prepared["b3"].shape),   # b3 (1, Ap), -1e30 in pad cols
            ],
            # Narrow output: last dim == full array dim A, so the block is legal
            # and only A columns per row are written back to HBM.
            out_specs=pl.BlockSpec((tile, A), lambda i: (i, 0)),
        ),
        compiler_params=pltpu.CompilerParams(
            dimension_semantics=("parallel",)),  # megacore-shardable on v7x
    )(state_p, prepared["w1"], prepared["b1"], prepared["w2"], prepared["b2"],
      prepared["w3"], prepared["b3"])

    return out if Bp == B else out[:B]


def init_params(key, input_dim, fc1_dims, fc2_dims, n_actions):
    """Deterministic init mimicking PyTorch Linear default U(-1/sqrt(in), 1/sqrt(in))."""
    ks = jax.random.split(key, 6)

    def lin(kw, kb, fan_in, fan_out):
        bound = 1.0 / jnp.sqrt(fan_in)
        w = jax.random.uniform(kw, (fan_in, fan_out), jnp.float32, -bound, bound)
        b = jax.random.uniform(kb, (1, fan_out), jnp.float32, -bound, bound)
        return w, b

    w1, b1 = lin(ks[0], ks[1], input_dim, fc1_dims)
    w2, b2 = lin(ks[2], ks[3], fc1_dims, fc2_dims)
    w3, b3 = lin(ks[4], ks[5], fc2_dims, n_actions)
    return {"w1": w1, "b1": b1, "w2": w2, "b2": b2, "w3": w3, "b3": b3}


def actor_forward_ref(state, p):
    """Pure-JAX f32 reference for correctness checking."""
    h1 = jnp.maximum(state @ p["w1"] + p["b1"], 0.0)
    h2 = jnp.maximum(h1 @ p["w2"] + p["b2"], 0.0)
    logits = h2 @ p["w3"] + p["b3"]
    return jax.nn.softmax(logits, axis=-1)


if __name__ == "__main__":
    # Small shapes consistent with the module: input_dims=(8,), fc1=fc2=256,
    # n_actions=4, batch=8.
    key = jax.random.PRNGKey(0)
    k_params, k_state, k_state2 = jax.random.split(key, 3)

    input_dim = 8
    fc1_dims = 256
    fc2_dims = 256
    n_actions = 4
    batch = 8

    params = init_params(k_params, input_dim, fc1_dims, fc2_dims, n_actions)
    state = jax.random.normal(k_state, (batch, input_dim), jnp.float32)
    ref = actor_forward_ref(state, params)

    # One-time weight preparation (hoisted out of the per-step call).
    prep_f32 = prepare_params(params, matmul_dtype=jnp.float32)
    prep_bf16 = prepare_params(params, matmul_dtype=jnp.bfloat16)

    # f32 matmul path: tight check (only the approx-reciprocal epilogue differs).
    probs_f32 = jax.block_until_ready(actor_forward(state, prep_f32))
    assert probs_f32.shape == (batch, n_actions)
    assert jnp.allclose(jnp.sum(probs_f32, axis=-1), 1.0, atol=5e-3)
    assert jnp.allclose(probs_f32, ref, atol=5e-3, rtol=5e-3)

    # Default bf16 matmul path (MXU-native on v6e/v7x; bf16 exp there too).
    probs_bf16 = jax.block_until_ready(actor_forward(state, prep_bf16))
    assert probs_bf16.shape == (batch, n_actions)
    assert jnp.allclose(jnp.sum(probs_bf16, axis=-1), 1.0, atol=5e-3)
    assert jnp.allclose(probs_bf16, ref, atol=3e-2, rtol=3e-2)

    # Larger, ragged batch to exercise batch padding + the multi-step grid
    # (tile clamped so the grid has >= 2 steps for v7x megacore sharding).
    batch_big = 300
    state_big = jax.random.normal(k_state2, (batch_big, input_dim), jnp.float32)
    ref_big = actor_forward_ref(state_big, params)
    probs_big = jax.block_until_ready(actor_forward(state_big, prep_bf16))
    assert probs_big.shape == (batch_big, n_actions)
    assert jnp.allclose(jnp.sum(probs_big, axis=-1), 1.0, atol=5e-3)
    assert jnp.allclose(probs_big, ref_big, atol=3e-2, rtol=3e-2)

    # TODO(synk): torch.distributions.Categorical (and the Adam optimizer /
    # checkpoint I/O) have no Pallas equivalent; the kernel returns the
    # distribution's `probs`, which fully determines the Categorical.
    print("KERNEL_OK")
</pallas_src>

<mosaic_0001>
module attributes {stable_mosaic.version = 11 : i64} {
  func.func @actor_mlp_kernel(%arg0: i32, %arg1: memref<8x8xf32, #tpu.memory_space<vmem>>, %arg2: memref<8x256xf32, #tpu.memory_space<vmem>>, %arg3: memref<1x256xf32, #tpu.memory_space<vmem>>, %arg4: memref<256x256xf32, #tpu.memory_space<vmem>>, %arg5: memref<1x256xf32, #tpu.memory_space<vmem>>, %arg6: memref<256x128xf32, #tpu.memory_space<vmem>>, %arg7: memref<1x128xf32, #tpu.memory_space<vmem>>, %arg8: memref<8x4xf32, #tpu.memory_space<vmem>>) attributes {dimension_semantics = [#tpu.dimension_semantics<parallel>], iteration_bounds = array<i64: 1>, scalar_prefetch = 0 : i64, scratch_operands = 0 : i64, tpu.core_type = #tpu.core_type<tc>, window_params = [{transform_indices = @transform_0, window_bounds = array<i64: 8, 8>}, {pipeline_mode = #tpu.pipeline_mode<synchronous>, transform_indices = @transform_1, window_bounds = array<i64: 8, 256>}, {pipeline_mode = #tpu.pipeline_mode<synchronous>, transform_indices = @transform_2, window_bounds = array<i64: 1, 256>}, {pipeline_mode = #tpu.pipeline_mode<synchronous>, transform_indices = @transform_3, window_bounds = array<i64: 256, 256>}, {pipeline_mode = #tpu.pipeline_mode<synchronous>, transform_indices = @transform_4, window_bounds = array<i64: 1, 256>}, {pipeline_mode = #tpu.pipeline_mode<synchronous>, transform_indices = @transform_5, window_bounds = array<i64: 256, 128>}, {pipeline_mode = #tpu.pipeline_mode<synchronous>, transform_indices = @transform_6, window_bounds = array<i64: 1, 128>}, {transform_indices = @transform_7, window_bounds = array<i64: 8, 4>}]} {
    %c0 = arith.constant 0 : index
    %c0_0 = arith.constant 0 : index
    %0 = vector.load %arg1[%c0, %c0_0] : memref<8x8xf32, #tpu.memory_space<vmem>>, vector<8x8xf32>
    %c0_1 = arith.constant 0 : index
    %c0_2 = arith.constant 0 : index
    %1 = vector.load %arg2[%c0_1, %c0_2] : memref<8x256xf32, #tpu.memory_space<vmem>>, vector<8x256xf32>
    %cst = arith.constant dense<0.000000e+00> : vector<8x256xf32>
    %2 = tpu.matmul %0, %1, %cst {dimension_numbers = #tpu.dot_dimension_numbers<[1], [0], [0], [1], [0, 0, 1, 1], [], []>} : vector<8x8xf32>, vector<8x256xf32>, vector<8x256xf32> -> vector<8x256xf32>
    %c0_3 = arith.constant 0 : index
    %c0_4 = arith.constant 0 : index
    %3 = vector.load %arg3[%c0_3, %c0_4] : memref<1x256xf32, #tpu.memory_space<vmem>>, vector<1x256xf32>
    %4 = vector.broadcast %3 : vector<1x256xf32> to vector<8x256xf32>
    %5 = arith.addf %2, %4 : vector<8x256xf32>
    %cst_5 = arith.constant 0.000000e+00 : f32
    %6 = vector.broadcast %cst_5 : f32 to vector<8x256xf32>
    %7 = arith.maximumf %5, %6 : vector<8x256xf32>
    %c0_6 = arith.constant 0 : index
    %c0_7 = arith.constant 0 : index
    %8 = vector.load %arg4[%c0_6, %c0_7] : memref<256x256xf32, #tpu.memory_space<vmem>>, vector<256x256xf32>
    %cst_8 = arith.constant dense<0.000000e+00> : vector<8x256xf32>
    %9 = tpu.matmul %7, %8, %cst_8 {dimension_numbers = #tpu.dot_dimension_numbers<[1], [0], [0], [1], [0, 0, 1, 1], [], []>} : vector<8x256xf32>, vector<256x256xf32>, vector<8x256xf32> -> vector<8x256xf32>
    %c0_9 = arith.constant 0 : index
    %c0_10 = arith.constant 0 : index
    %10 = vector.load %arg5[%c0_9, %c0_10] : memref<1x256xf32, #tpu.memory_space<vmem>>, vector<1x256xf32>
    %11 = vector.broadcast %10 : vector<1x256xf32> to vector<8x256xf32>
    %12 = arith.addf %9, %11 : vector<8x256xf32>
    %cst_11 = arith.constant 0.000000e+00 : f32
    %13 = vector.broadcast %cst_11 : f32 to vector<8x256xf32>
    %14 = arith.maximumf %12, %13 : vector<8x256xf32>
    %c0_12 = arith.constant 0 : index
    %c0_13 = arith.constant 0 : index
    %15 = vector.load %arg6[%c0_12, %c0_13] : memref<256x128xf32, #tpu.memory_space<vmem>>, vector<256x128xf32>
    %cst_14 = arith.constant dense<0.000000e+00> : vector<8x128xf32>
    %16 = tpu.matmul %14, %15, %cst_14 {dimension_numbers = #tpu.dot_dimension_numbers<[1], [0], [0], [1], [0, 0, 1, 1], [], []>} : vector<8x256xf32>, vector<256x128xf32>, vector<8x128xf32> -> vector<8x128xf32>
    %c0_15 = arith.constant 0 : index
    %c0_16 = arith.constant 0 : index
    %17 = vector.load %arg7[%c0_15, %c0_16] : memref<1x128xf32, #tpu.memory_space<vmem>>, vector<1x128xf32>
    %18 = vector.broadcast %17 : vector<1x128xf32> to vector<8x128xf32>
    %19 = arith.addf %16, %18 : vector<8x128xf32>
    %cst_17 = arith.constant dense<0xFF800000> : vector<8xf32>
    %20 = vector.multi_reduction <maximumf>, %19, %cst_17 [1] : vector<8x128xf32> to vector<8xf32>
    %21 = vector.shape_cast %20 : vector<8xf32> to vector<8x1xf32>
    %22 = vector.broadcast %21 : vector<8x1xf32> to vector<8x128xf32>
    %23 = arith.subf %19, %22 : vector<8x128xf32>
    %24 = math.exp %23 : vector<8x128xf32>
    %cst_18 = arith.constant dense<0.000000e+00> : vector<8xf32>
    %25 = vector.multi_reduction <add>, %24, %cst_18 [1] : vector<8x128xf32> to vector<8xf32>
    %26 = vector.shape_cast %25 : vector<8xf32> to vector<8x1xf32>
    %27 = tpu.reciprocal %26 {approx = true} : vector<8x1xf32> -> vector<8x1xf32>
    %28 = vector.broadcast %27 : vector<8x1xf32> to vector<8x128xf32>
    %29 = arith.mulf %24, %28 : vector<8x128xf32>
    %30 = vector.extract_strided_slice %29 {offsets = [0, 0], sizes = [8, 4], strides = [1, 1]} : vector<8x128xf32> to vector<8x4xf32>
    %c0_19 = arith.constant 0 : index
    %c0_20 = arith.constant 0 : index
    %31 = vector.load %arg8[%c0_19, %c0_20] : memref<8x4xf32, #tpu.memory_space<vmem>>, vector<8x4xf32>
    tpu.vector_store %arg8[%c0_19, %c0_20], %30 {strides = array<i32>} : memref<8x4xf32, #tpu.memory_space<vmem>>, vector<8x4xf32>,
    return
  }
  func.func @transform_0(%arg0: i32) -> (i32, i32) {
    %c0_i32 = arith.constant 0 : i32
    %c0_i32_0 = arith.constant 0 : i32
    return %arg0, %c0_i32 : i32, i32
  }
  func.func @transform_1(%arg0: i32) -> (i32, i32) {
    %c0_i32 = arith.constant 0 : i32
    %c0_i32_0 = arith.constant 0 : i32
    %c0_i32_1 = arith.constant 0 : i32
    return %c0_i32, %c0_i32_0 : i32, i32
  }
  func.func @transform_2(%arg0: i32) -> (i32, i32) {
    %c0_i32 = arith.constant 0 : i32
    %c0_i32_0 = arith.constant 0 : i32
    %c0_i32_1 = arith.constant 0 : i32
    return %c0_i32, %c0_i32_0 : i32, i32
  }
  func.func @transform_3(%arg0: i32) -> (i32, i32) {
    %c0_i32 = arith.constant 0 : i32
    %c0_i32_0 = arith.constant 0 : i32
    %c0_i32_1 = arith.constant 0 : i32
    return %c0_i32, %c0_i32_0 : i32, i32
  }
  func.func @transform_4(%arg0: i32) -> (i32, i32) {
    %c0_i32 = arith.constant 0 : i32
    %c0_i32_0 = arith.constant 0 : i32
    %c0_i32_1 = arith.constant 0 : i32
    return %c0_i32, %c0_i32_0 : i32, i32
  }
  func.func @transform_5(%arg0: i32) -> (i32, i32) {
    %c0_i32 = arith.constant 0 : i32
    %c0_i32_0 = arith.constant 0 : i32
    %c0_i32_1 = arith.constant 0 : i32
    return %c0_i32, %c0_i32_0 : i32, i32
  }
  func.func @transform_6(%arg0: i32) -> (i32, i32) {
    %c0_i32 = arith.constant 0 : i32
    %c0_i32_0 = arith.constant 0 : i32
    %c0_i32_1 = arith.constant 0 : i32
    return %c0_i32, %c0_i32_0 : i32, i32
  }
  func.func @transform_7(%arg0: i32) -> (i32, i32) {
    %c0_i32 = arith.constant 0 : i32
    %c0_i32_0 = arith.constant 0 : i32
    return %arg0, %c0_i32 : i32, i32
  }
}

</mosaic_0001>

<llo_original>
// kernel: tpu_custom_call.1
$region0: #{tpu_custom_call.1}
  #allocation0 [shape = 'u32[]', space=smem, size = 0x4, offset = 0x4, fixed_abs, tag = 'smem constant byte address 0x4 - core index']
  #allocation1 [shape = 'u32[144,128]{1,0:T(1,128)}', space=vmem, size = 0x12000, scoped, tag = 'internal scratch']
  %s0 = inlined_call_operand.hbm [shape: f32[8,8], index: 0, kind: input, shape index: {}]
  %s1 = inlined_call_operand.hbm [shape: f32[8,256], index: 1, kind: input, shape index: {}]
  %s2 = inlined_call_operand.vmem [shape: f32[1,256], index: 2, kind: input, shape index: {}]
  %s3 = inlined_call_operand.hbm [shape: f32[256,256], index: 3, kind: input, shape index: {}]
  %s4 = inlined_call_operand.vmem [shape: f32[1,256], index: 4, kind: input, shape index: {}]
  %s5 = inlined_call_operand.hbm [shape: f32[256,128], index: 5, kind: input, shape index: {}]
  %s6 = inlined_call_operand.vmem [shape: f32[1,128], index: 6, kind: input, shape index: {}]
  %s7 = inlined_call_operand.vmem [shape: f32[8,4], index: 7, kind: output, shape index: {}]
  %s8 = sld [smem:[#allocation0]]
  $region54: #{tpu_custom_call.1} parent=0
    _
  %s10 = ssub.s32 1, %s8
  %s11 = scalar_select 0, %s10, %s8
  $region1: #{tpu_custom_call.1} parent=0
    #allocation2 [shape = 'u8[4096]{0}', space=vmem, size = 0x1000, scoped, tag = 'input window, operand 0, single buffered']
    #allocation3 [shape = 's32[1]{0}', space=sflag, size = 0x4, scoped, tag = 'scoped memory for tpu_custom_call.1']
    #allocation4 [shape = 'u8[8192]{0}', space=vmem, size = 0x2000, scoped, tag = 'input window, operand 1, single buffered']
    #allocation5 [shape = 's32[1]{0}', space=sflag, size = 0x4, scoped, tag = 'scoped memory for tpu_custom_call.1']
    #allocation6 [shape = 'u8[262144]{0}', space=vmem, size = 0x40000, scoped, tag = 'input window, operand 3, single buffered']
    #allocation7 [shape = 'u8[131072]{0}', space=vmem, size = 0x20000, scoped, tag = 'input window, operand 5, single buffered']
    #allocation8 [shape = 's32[1]{0}', space=sflag, size = 0x4, scoped, tag = 'scoped memory for tpu_custom_call.1']
    %12 = vsyncpa [#allocation3], 0
    %13 = vsyncpa [#allocation5], 0
    %14 = vsyncpa [#allocation8], 0
    // Predicated region
    $region2: #{tpu_custom_call.1} parent=1 // pred_check
      _
    $region3: #{tpu_custom_call.1} parent=1 // pred_check_branch
      %16 = sbr.rel (0) target = $region5
    $region4: #{tpu_custom_call.1} parent=1 // pred_region
      %s18 = ssub.s32 128, 128
      %19 = vsyncadd [#allocation3], %s18
      %s21 = sshll.u32 [#allocation2], 4
      %s22 = int_to_ptr.vmem [resolvable:$true] %s21
      %24 = dma.hbm_to_vmem [thread:$0]  %s0, 128, %s22, [#allocation3]
    $region5: #{tpu_custom_call.1} parent=1 // pred_fallthru
      _
    // Predicated region
    $region6: #{tpu_custom_call.1} parent=1 // pred_check
      _
    $region7: #{tpu_custom_call.1} parent=1 // pred_check_branch
      %26 = sbr.rel (0) target = $region9
    $region8: #{tpu_custom_call.1} parent=1 // pred_region
      %s28 = ssub.s32 256, 256
      %29 = vsyncadd [#allocation5], %s28
      %s31 = sshll.u32 [#allocation4], 4
      %s32 = int_to_ptr.vmem [resolvable:$true] %s31
      %34 = dma.hbm_to_vmem [thread:$0]  %s1, 256, %s32, [#allocation5]
    $region9: #{tpu_custom_call.1} parent=1 // pred_fallthru
      _
    // Predicated region
    $region10: #{tpu_custom_call.1} parent=1 // pred_check
      _
    $region11: #{tpu_custom_call.1} parent=1 // pred_check_branch
      %36 = sbr.rel (0) target = $region13
    $region12: #{tpu_custom_call.1} parent=1 // pred_region
      _
    $region13: #{tpu_custom_call.1} parent=1 // pred_fallthru
      _
    // Predicated region
    $region14: #{tpu_custom_call.1} parent=1 // pred_check
      _
    $region15: #{tpu_custom_call.1} parent=1 // pred_check_branch
      %38 = sbr.rel (0) target = $region17
    $region16: #{tpu_custom_call.1} parent=1 // pred_region
      %s40 = ssub.s32 8192, 8192
      %41 = vsyncadd [#allocation5], %s40
      %s42 = sshll.u32 [#allocation6], 4
      %s43 = int_to_ptr.vmem [resolvable:$true] %s42
      %48 = dma.hbm_to_vmem [thread:$0]  %s3, 8192, %s43, [#allocation5], 256, 256, 16
    $region17: #{tpu_custom_call.1} parent=1 // pred_fallthru
      _
    // Predicated region
    $region18: #{tpu_custom_call.1} parent=1 // pred_check
      _
    $region19: #{tpu_custom_call.1} parent=1 // pred_check_branch
      %50 = sbr.rel (0) target = $region21
    $region20: #{tpu_custom_call.1} parent=1 // pred_region
      _
    $region21: #{tpu_custom_call.1} parent=1 // pred_fallthru
      _
    // Predicated region
    $region22: #{tpu_custom_call.1} parent=1 // pred_check
      _
    $region23: #{tpu_custom_call.1} parent=1 // pred_check_branch
      %52 = sbr.rel (0) target = $region25
    $region24: #{tpu_custom_call.1} parent=1 // pred_region
      %s54 = ssub.s32 4096, 4096
      %55 = vsyncadd [#allocation8], %s54
      %s56 = sshll.u32 [#allocation7], 4
      %s57 = int_to_ptr.vmem [resolvable:$true] %s56
      %62 = dma.hbm_to_vmem [thread:$0]  %s5, 4096, %s57, [#allocation8], 128, 128, 8
    $region25: #{tpu_custom_call.1} parent=1 // pred_fallthru
      _
    // Predicated region
    $region26: #{tpu_custom_call.1} parent=1 // pred_check
      _
    $region27: #{tpu_custom_call.1} parent=1 // pred_check_branch
      %64 = sbr.rel (0) target = $region29
    $region28: #{tpu_custom_call.1} parent=1 // pred_region
      _
    $region29: #{tpu_custom_call.1} parent=1 // pred_fallthru
      _
    // Predicated region
    $region30: #{tpu_custom_call.1} parent=1 // pred_check
      _
    $region31: #{tpu_custom_call.1} parent=1 // pred_check_branch
      %66 = sbr.rel (0) target = $region33
    $region32: #{tpu_custom_call.1} parent=1 // pred_region
      %67 = dma.done [#allocation3], 128
    $region33: #{tpu_custom_call.1} parent=1 // pred_fallthru
      _
    // Predicated region
    $region34: #{tpu_custom_call.1} parent=1 // pred_check
      _
    $region35: #{tpu_custom_call.1} parent=1 // pred_check_branch
      %69 = sbr.rel (0) target = $region37
    $region36: #{tpu_custom_call.1} parent=1 // pred_region
      %70 = dma.done [#allocation5], 256
    $region37: #{tpu_custom_call.1} parent=1 // pred_fallthru
      _
    // Predicated region
    $region38: #{tpu_custom_call.1} parent=1 // pred_check
      _
    $region39: #{tpu_custom_call.1} parent=1 // pred_check_branch
      %72 = sbr.rel (0) target = $region41
    $region40: #{tpu_custom_call.1} parent=1 // pred_region
      %73 = dma.done [#allocation5], 8192
    $region41: #{tpu_custom_call.1} parent=1 // pred_fallthru
      _
    // Predicated region
    $region42: #{tpu_custom_call.1} parent=1 // pred_check
      _
    $region43: #{tpu_custom_call.1} parent=1 // pred_check_branch
      %75 = sbr.rel (0) target = $region45
    $region44: #{tpu_custom_call.1} parent=1 // pred_region
      %76 = dma.done [#allocation8], 4096
    $region45: #{tpu_custom_call.1} parent=1 // pred_fallthru
      _
    %v77 = vld [vmem:[#allocation2] sm:$0xff]
    %v78 = vld [vmem:[#allocation4] sm:$0xff]
    %v79 = vld [vmem:[#allocation4 + $0x8] sm:$0xff]
    %v80 = vld [vmem:[%s2] sm:$0x3]
    %v82 = vlaneseq
    %v83 = vshrl.u32 %v82, 7
    %v84 = vsub.s32 0, %v83
    %v85 = vrot.slane %v80, %v84
    %v86 = vlaneseq
    %v87 = vshrl.u32 %v86, 7
    %v88 = vsub.s32 1, %v87
    %v89 = vrot.slane %v80, %v88
    %vm92 = vcmask 64512
    %v94 = vsel %vm92, %v77, 0
    %96 = vmatprep.subr.mxu0 %v79
    %97 = vmatpush1.msra.mxu0 %v78
    %98 = vmatprep.subr.mxu0 0.0
    %99 = vmatpush1.msra.mxu0 0.0
    %100 = vmatprep.subr.mxu0 0.0
    %101 = vmatpush1.msra.mxu0 0.0
    %102 = vmatprep.subr.mxu0 0.0
    %103 = vmatpush1.msra.mxu0 0.0
    %104 = vmatprep.subr.mxu0 0.0
    %105 = vmatpush1.msra.mxu0 0.0
    %106 = vmatprep.subr.mxu0 0.0
    %107 = vmatpush1.msra.mxu0 0.0
    %108 = vmatprep.subr.mxu0 0.0
    %109 = vmatpush1.msra.mxu0 0.0
    %110 = vmatprep.subr.mxu0 0.0
    %111 = vmatpush1.msra.mxu0 0.0
    %112 = vmatprep.subr.mxu0 0.0
    %113 = vmatpush1.msra.mxu0 0.0
    %114 = vmatprep.subr.mxu0 0.0
    %115 = vmatpush1.msra.mxu0 0.0
    %116 = vmatprep.subr.mxu0 0.0
    %117 = vmatpush1.msra.mxu0 0.0
    %118 = vmatprep.subr.mxu0 0.0
    %119 = vmatpush1.msra.mxu0 0.0
    %120 = vmatprep.subr.mxu0 0.0
    %121 = vmatpush1.msra.mxu0 0.0
    %122 = vmatprep.subr.mxu0 0.0
    %123 = vmatpush1.msra.mxu0 0.0
    %124 = vmatprep.subr.mxu0 0.0
    %125 = vmatpush1.msra.mxu0 0.0
    %126 = vmatprep.subr.mxu0 0.0
    %127 = vmatpush1.msra.mxu0 0.0
    %128 = vmatprep.subr.mxu0 0.0
    %129 = vmatpush1.msra.mxu0 0.0
    %130 = vmatprep.subr.mxu0 0.0
    %131 = vmatpush1.msra.mxu0 0.0
    %132 = vmatprep.subr.mxu0 0.0
    %133 = vmatpush1.msra.mxu0 0.0
    %134 = vmatprep.subr.mxu0 0.0
    %135 = vmatpush1.msra.mxu0 0.0
    %136 = vmatprep.subr.mxu0 0.0
    %137 = vmatpush1.msra.mxu0 0.0
    %138 = vmatprep.subr.mxu0 0.0
    %139 = vmatpush1.msra.mxu0 0.0
    %140 = vmatprep.subr.mxu0 0.0
    %141 = vmatpush1.msra.mxu0 0.0
    %142 = vmatprep.subr.mxu0 0.0
    %143 = vmatpush1.msra.mxu0 0.0
    %144 = vmatprep.subr.mxu0 0.0
    %145 = vmatpush1.msra.mxu0 0.0
    %146 = vmatprep.subr.mxu0 0.0
    %147 = vmatpush1.msra.mxu0 0.0
    %148 = vmatprep.subr.mxu0 0.0
    %149 = vmatpush1.msra.mxu0 0.0
    %150 = vmatprep.subr.mxu0 0.0
    %151 = vmatpush1.msra.mxu0 0.0
    %152 = vmatprep.subr.mxu0 0.0
    %153 = vmatpush1.msra.mxu0 0.0
    %154 = vmatprep.subr.mxu0 0.0
    %155 = vmatpush1.msra.mxu0 0.0
    %156 = vmatprep.subr.mxu0 0.0
    %157 = vmatpush1.msra.mxu0 0.0
    %158 = vmatprep.subr.mxu0 0.0
    %159 = vmatpush1.msra.mxu0 0.0
    %160 = vmatprep.mubr.f32.mxu0 0.0
    %161 = vmatmul.mubr.f32.gmra.mrb[0].mxu0 %v94
    %v162 = vpop.f32.mrb[0].mxu0
    %v163 = vadd.f32 %v85, %v162
    %v164 = vpop.f32.mrb[0].mxu0
    %v165 = vadd.f32 %v89, %v164
    %166 = vdwg.mxu0
    %v167 = vmax.f32 %v163, 0.0
    %v168 = vmax.f32 %v165, 0.0
    %v169 = vld [vmem:[#allocation6] sm:$0xff]
    %v170 = vld [vmem:[#allocation6 + $0x8] sm:$0xff]
    %v171 = vld [vmem:[#allocation6 + $0x10] sm:$0xff]
    %v172 = vld [vmem:[#allocation6 + $0x18] sm:$0xff]
    %v173 = vld [vmem:[#allocation6 + $0x20] sm:$0xff]
    %v174 = vld [vmem:[#allocation6 + $0x28] sm:$0xff]
    %v175 = vld [vmem:[#allocation6 + $0x30] sm:$0xff]
    %v176 = vld [vmem:[#allocation6 + $0x38] sm:$0xff]
    %v177 = vld [vmem:[#allocation6 + $0x40] sm:$0xff]
    %v178 = vld [vmem:[#allocation6 + $0x48] sm:$0xff]
    %v179 = vld [vmem:[#allocation6 + $0x50] sm:$0xff]
    %v180 = vld [vmem:[#allocation6 + $0x58] sm:$0xff]
    %v181 = vld [vmem:[#allocation6 + $0x60] sm:$0xff]
    %v182 = vld [vmem:[#allocation6 + $0x68] sm:$0xff]
    %v183 = vld [vmem:[#allocation6 + $0x70] sm:$0xff]
    %v184 = vld [vmem:[#allocation6 + $0x78] sm:$0xff]
    %v185 = vld [vmem:[#allocation6 + $0x80] sm:$0xff]
    %v186 = vld [vmem:[#allocation6 + $0x88] sm:$0xff]
    %v187 = vld [vmem:[#allocation6 + $0x90] sm:$0xff]
    %v188 = vld [vmem:[#allocation6 + $0x98] sm:$0xff]
    %v189 = vld [vmem:[#allocation6 + $0xa0] sm:$0xff]
    %v190 = vld [vmem:[#allocation6 + $0xa8] sm:$0xff]
    %v191 = vld [vmem:[#allocation6 + $0xb0] sm:$0xff]
    %v192 = vld [vmem:[#allocation6 + $0xb8] sm:$0xff]
    %v193 = vld [vmem:[#allocation6 + $0xc0] sm:$0xff]
    %v194 = vld [vmem:[#allocation6 + $0xc8] sm:$0xff]
    %v195 = vld [vmem:[#allocation6 + $0xd0] sm:$0xff]
    %v196 = vld [vmem:[#allocation6 + $0xd8] sm:$0xff]
    %v197 = vld [vmem:[#allocation6 + $0xe0] sm:$0xff]
    %v198 = vld [vmem:[#allocation6 + $0xe8] sm:$0xff]
    %v199 = vld [vmem:[#allocation6 + $0xf0] sm:$0xff]
    %v200 = vld [vmem:[#allocation6 + $0xf8] sm:$0xff]
    %v201 = vld [vmem:[#allocation6 + $0x100] sm:$0xff]
    %v202 = vld [vmem:[#allocation6 + $0x108] sm:$0xff]
    %v203 = vld [vmem:[#allocation6 + $0x110] sm:$0xff]
    %v204 = vld [vmem:[#allocation6 + $0x118] sm:$0xff]
    %v205 = vld [vmem:[#allocation6 + $0x120] sm:$0xff]
    %v206 = vld [vmem:[#allocation6 + $0x128] sm:$0xff]
    %v207 = vld [vmem:[#allocation6 + $0x130] sm:$0xff]
    %v208 = vld [vmem:[#allocation6 + $0x138] sm:$0xff]
    %v209 = vld [vmem:[#allocation6 + $0x140] sm:$0xff]
    %v210 = vld [vmem:[#allocation6 + $0x148] sm:$0xff]
    %v211 = vld [vmem:[#allocation6 + $0x150] sm:$0xff]
    %v212 = vld [vmem:[#allocation6 + $0x158] sm:$0xff]
    %v213 = vld [vmem:[#allocation6 + $0x160] sm:$0xff]
    %v214 = vld [vmem:[#allocation6 + $0x168] sm:$0xff]
    %v215 = vld [vmem:[#allocation6 + $0x170] sm:$0xff]
    %v216 = vld [vmem:[#allocation6 + $0x178] sm:$0xff]
    %v217 = vld [vmem:[#allocation6 + $0x180] sm:$0xff]
    %v218 = vld [vmem:[#allocation6 + $0x188] sm:$0xff]
    %v219 = vld [vmem:[#allocation6 + $0x190] sm:$0xff]
    %v220 = vld [vmem:[#allocation6 + $0x198] sm:$0xff]
    %v221 = vld [vmem:[#allocation6 + $0x1a0] sm:$0xff]
    %v222 = vld [vmem:[#allocation6 + $0x1a8] sm:$0xff]
    %v223 = vld [vmem:[#allocation6 + $0x1b0] sm:$0xff]
    %v224 = vld [vmem:[#allocation6 + $0x1b8] sm:$0xff]
    %v225 = vld [vmem:[#allocation6 + $0x1c0] sm:$0xff]
    %v226 = vld [vmem:[#allocation6 + $0x1c8] sm:$0xff]
    %v227 = vld [vmem:[#allocation6 + $0x1d0] sm:$0xff]
    %v228 = vld [vmem:[#allocation6 + $0x1d8] sm:$0xff]
    %v229 = vld [vmem:[#allocation6 + $0x1e0] sm:$0xff]
    %v230 = vld [vmem:[#allocation6 + $0x1e8] sm:$0xff]
    %v231 = vld [vmem:[#allocation6 + $0x1f0] sm:$0xff]
    %v232 = vld [vmem:[#allocation6 + $0x1f8] sm:$0xff]
    %v233 = vld [vmem:[%s4] sm:$0x3]
    %v235 = vlaneseq
    %v236 = vshrl.u32 %v235, 7
    %v237 = vsub.s32 0, %v236
    %v238 = vrot.slane %v233, %v237
    %v239 = vlaneseq
    %v240 = vshrl.u32 %v239, 7
    %v241 = vsub.s32 1, %v240
    %v242 = vrot.slane %v233, %v241
    %245 = vmatprep.subr.mxu0 %v170
    %246 = vmatpush1.msra.mxu0 %v169
    %247 = vmatprep.subr.mxu0 %v172
    %248 = vmatpush1.msra.mxu0 %v171
    %249 = vmatprep.subr.mxu0 %v174
    %250 = vmatpush1.msra.mxu0 %v173
    %251 = vmatprep.subr.mxu0 %v176
    %252 = vmatpush1.msra.mxu0 %v175
    %253 = vmatprep.subr.mxu0 %v178
    %254 = vmatpush1.msra.mxu0 %v177
    %255 = vmatprep.subr.mxu0 %v180
    %256 = vmatpush1.msra.mxu0 %v179
    %257 = vmatprep.subr.mxu0 %v182
    %258 = vmatpush1.msra.mxu0 %v181
    %259 = vmatprep.subr.mxu0 %v184
    %260 = vmatpush1.msra.mxu0 %v183
    %261 = vmatprep.subr.mxu0 %v186
    %262 = vmatpush1.msra.mxu0 %v185
    %263 = vmatprep.subr.mxu0 %v188
    %264 = vmatpush1.msra.mxu0 %v187
    %265 = vmatprep.subr.mxu0 %v190
    %266 = vmatpush1.msra.mxu0 %v189
    %267 = vmatprep.subr.mxu0 %v192
    %268 = vmatpush1.msra.mxu0 %v191
    %269 = vmatprep.subr.mxu0 %v194
    %270 = vmatpush1.msra.mxu0 %v193
    %271 = vmatprep.subr.mxu0 %v196
    %272 = vmatpush1.msra.mxu0 %v195
    %273 = vmatprep.subr.mxu0 %v198
    %274 = vmatpush1.msra.mxu0 %v197
    %275 = vmatprep.subr.mxu0 %v200
    %276 = vmatpush1.msra.mxu0 %v199
    %277 = vmatprep.subr.mxu0 %v202
    %278 = vmatpush1.msra.mxu0 %v201
    %279 = vmatprep.subr.mxu0 %v204
    %280 = vmatpush1.msra.mxu0 %v203
    %281 = vmatprep.subr.mxu0 %v206
    %282 = vmatpush1.msra.mxu0 %v205
    %283 = vmatprep.subr.mxu0 %v208
    %284 = vmatpush1.msra.mxu0 %v207
    %285 = vmatprep.subr.mxu0 %v210
    %286 = vmatpush1.msra.mxu0 %v209
    %287 = vmatprep.subr.mxu0 %v212
    %288 = vmatpush1.msra.mxu0 %v211
    %289 = vmatprep.subr.mxu0 %v214
    %290 = vmatpush1.msra.mxu0 %v213
    %291 = vmatprep.subr.mxu0 %v216
    %292 = vmatpush1.msra.mxu0 %v215
    %293 = vmatprep.subr.mxu0 %v218
    %294 = vmatpush1.msra.mxu0 %v217
    %295 = vmatprep.subr.mxu0 %v220
    %296 = vmatpush1.msra.mxu0 %v219
    %297 = vmatprep.subr.mxu0 %v222
    %298 = vmatpush1.msra.mxu0 %v221
    %299 = vmatprep.subr.mxu0 %v224
    %300 = vmatpush1.msra.mxu0 %v223
    %301 = vmatprep.subr.mxu0 %v226
    %302 = vmatpush1.msra.mxu0 %v225
    %303 = vmatprep.subr.mxu0 %v228
    %304 = vmatpush1.msra.mxu0 %v227
    %305 = vmatprep.subr.mxu0 %v230
    %306 = vmatpush1.msra.mxu0 %v229
    %307 = vmatprep.subr.mxu0 %v232
    %308 = vmatpush1.msra.mxu0 %v231
    %309 = vmatprep.mubr.f32.mxu0 %v168
    %310 = vmatmul.mubr.f32.gmra.mrb[0].mxu0 %v167
    %v311 = vpop.f32.mrb[0].mxu0
    %v312 = vadd.f32 %v238, %v311
    %v313 = vpop.f32.mrb[0].mxu0
    %v314 = vadd.f32 %v242, %v313
    %315 = vdwg.mxu0
    %v316 = vmax.f32 %v312, 0.0
    %v317 = vmax.f32 %v314, 0.0
    %v318 = vld [vmem:[#allocation7] sm:$0xff]
    %v319 = vld [vmem:[#allocation7 + $0x8] sm:$0xff]
    %v320 = vld [vmem:[#allocation7 + $0x10] sm:$0xff]
    %v321 = vld [vmem:[#allocation7 + $0x18] sm:$0xff]
    %v322 = vld [vmem:[#allocation7 + $0x20] sm:$0xff]
    %v323 = vld [vmem:[#allocation7 + $0x28] sm:$0xff]
    %v324 = vld [vmem:[#allocation7 + $0x30] sm:$0xff]
    %v325 = vld [vmem:[#allocation7 + $0x38] sm:$0xff]
    %v326 = vld [vmem:[#allocation7 + $0x40] sm:$0xff]
    %v327 = vld [vmem:[#allocation7 + $0x48] sm:$0xff]
    %v328 = vld [vmem:[#allocation7 + $0x50] sm:$0xff]
    %v329 = vld [vmem:[#allocation7 + $0x58] sm:$0xff]
    %v330 = vld [vmem:[#allocation7 + $0x60] sm:$0xff]
    %v331 = vld [vmem:[#allocation7 + $0x68] sm:$0xff]
    %v332 = vld [vmem:[#allocation7 + $0x70] sm:$0xff]
    %v333 = vld [vmem:[#allocation7 + $0x78] sm:$0xff]
    %v334 = vld [vmem:[#allocation7 + $0x80] sm:$0xff]
    %v335 = vld [vmem:[#allocation7 + $0x88] sm:$0xff]
    %v336 = vld [vmem:[#allocation7 + $0x90] sm:$0xff]
    %v337 = vld [vmem:[#allocation7 + $0x98] sm:$0xff]
    %v338 = vld [vmem:[#allocation7 + $0xa0] sm:$0xff]
    %v339 = vld [vmem:[#allocation7 + $0xa8] sm:$0xff]
    %v340 = vld [vmem:[#allocation7 + $0xb0] sm:$0xff]
    %v341 = vld [vmem:[#allocation7 + $0xb8] sm:$0xff]
    %v342 = vld [vmem:[#allocation7 + $0xc0] sm:$0xff]
    %v343 = vld [vmem:[#allocation7 + $0xc8] sm:$0xff]
    %v344 = vld [vmem:[#allocation7 + $0xd0] sm:$0xff]
    %v345 = vld [vmem:[#allocation7 + $0xd8] sm:$0xff]
    %v346 = vld [vmem:[#allocation7 + $0xe0] sm:$0xff]
    %v347 = vld [vmem:[#allocation7 + $0xe8] sm:$0xff]
    %v348 = vld [vmem:[#allocation7 + $0xf0] sm:$0xff]
    %v349 = vld [vmem:[#allocation7 + $0xf8] sm:$0xff]
    %v350 = vld [vmem:[%s6] sm:$0x1]
    %v352 = vlaneseq
    %v353 = vshrl.u32 %v352, 7
    %v354 = vsub.s32 0, %v353
    %v355 = vrot.slane %v350, %v354
    %357 = vmatprep.subr.mxu0 0.0
    %358 = vmatpush1.msra.mxu0 %v318
    %359 = vmatprep.subr.mxu0 0.0
    %360 = vmatpush1.msra.mxu0 %v319
    %361 = vmatprep.subr.mxu0 0.0
    %362 = vmatpush1.msra.mxu0 %v320
    %363 = vmatprep.subr.mxu0 0.0
    %364 = vmatpush1.msra.mxu0 %v321
    %365 = vmatprep.subr.mxu0 0.0
    %366 = vmatpush1.msra.mxu0 %v322
    %367 = vmatprep.subr.mxu0 0.0
    %368 = vmatpush1.msra.mxu0 %v323
    %369 = vmatprep.subr.mxu0 0.0
    %370 = vmatpush1.msra.mxu0 %v324
    %371 = vmatprep.subr.mxu0 0.0
    %372 = vmatpush1.msra.mxu0 %v325
    %373 = vmatprep.subr.mxu0 0.0
    %374 = vmatpush1.msra.mxu0 %v326
    %375 = vmatprep.subr.mxu0 0.0
    %376 = vmatpush1.msra.mxu0 %v327
    %377 = vmatprep.subr.mxu0 0.0
    %378 = vmatpush1.msra.mxu0 %v328
    %379 = vmatprep.subr.mxu0 0.0
    %380 = vmatpush1.msra.mxu0 %v329
    %381 = vmatprep.subr.mxu0 0.0
    %382 = vmatpush1.msra.mxu0 %v330
    %383 = vmatprep.subr.mxu0 0.0
    %384 = vmatpush1.msra.mxu0 %v331
    %385 = vmatprep.subr.mxu0 0.0
    %386 = vmatpush1.msra.mxu0 %v332
    %387 = vmatprep.subr.mxu0 0.0
    %388 = vmatpush1.msra.mxu0 %v333
    %389 = vmatprep.subr.mxu0 0.0
    %390 = vmatpush1.msra.mxu0 %v334
    %391 = vmatprep.subr.mxu0 0.0
    %392 = vmatpush1.msra.mxu0 %v335
    %393 = vmatprep.subr.mxu0 0.0
    %394 = vmatpush1.msra.mxu0 %v336
    %395 = vmatprep.subr.mxu0 0.0
    %396 = vmatpush1.msra.mxu0 %v337
    %397 = vmatprep.subr.mxu0 0.0
    %398 = vmatpush1.msra.mxu0 %v338
    %399 = vmatprep.subr.mxu0 0.0
    %400 = vmatpush1.msra.mxu0 %v339
    %401 = vmatprep.subr.mxu0 0.0
    %402 = vmatpush1.msra.mxu0 %v340
    %403 = vmatprep.subr.mxu0 0.0
    %404 = vmatpush1.msra.mxu0 %v341
    %405 = vmatprep.subr.mxu0 0.0
    %406 = vmatpush1.msra.mxu0 %v342
    %407 = vmatprep.subr.mxu0 0.0
    %408 = vmatpush1.msra.mxu0 %v343
    %409 = vmatprep.subr.mxu0 0.0
    %410 = vmatpush1.msra.mxu0 %v344
    %411 = vmatprep.subr.mxu0 0.0
    %412 = vmatpush1.msra.mxu0 %v345
    %413 = vmatprep.subr.mxu0 0.0
    %414 = vmatpush1.msra.mxu0 %v346
    %415 = vmatprep.subr.mxu0 0.0
    %416 = vmatpush1.msra.mxu0 %v347
    %417 = vmatprep.subr.mxu0 0.0
    %418 = vmatpush1.msra.mxu0 %v348
    %419 = vmatprep.subr.mxu0 0.0
    %420 = vmatpush1.msra.mxu0 %v349
    %421 = vmatprep.mubr.f32.mxu0 %v317
    %422 = vmatmul.mubr.f32.gmra.mrb[0].mxu0 %v316
    %v423 = vpop.f32.mrb[0].mxu0
    %v424 = vadd.f32 %v355, %v423
    %v425 = vpop.f32.mrb[0].mxu0
    %426 = vdwg.mxu0
    %427 = vmax.xlane.f32.xlu0 %v424
    %v428 = vpop.xlane.xlu0 %427
    %v429 = vsub.f32 %v424, %v428
    %v430 = vmul.f32 %v429, 1.442695
    %v431 = vpow.pop %v430
    %432 = vadd.xlane.f32.xlu0 %v431
    %v433 = vpop.xlane.xlu0 %432
    %v434 = vrcp.pop %v433
    %v435 = vmul.f32 %v431, %v434
    %vm436 = vcmask 31744
    %437 = vst.msk [vmem:[%s7] sm:$0xff] %vm436, %v435
    // Predicated region
    $region46: #{tpu_custom_call.1} parent=1 // pred_check
      _
    $region47: #{tpu_custom_call.1} parent=1 // pred_check_branch
      %439 = sbr.rel (0) target = $region49
    $region48: #{tpu_custom_call.1} parent=1 // pred_region
      _
    $region49: #{tpu_custom_call.1} parent=1 // pred_fallthru
      _
    // Predicated region
    $region50: #{tpu_custom_call.1} parent=1 // pred_check
      _
    $region51: #{tpu_custom_call.1} parent=1 // pred_check_branch
      %441 = sbr.rel (0) target = $region53
    $region52: #{tpu_custom_call.1} parent=1 // pred_region
      _
    $region53: #{tpu_custom_call.1} parent=1 // pred_fallthru
      _
    %442 = vsyncpa [#allocation3], 1
    %443 = vsyncpa [#allocation5], 1
    %444 = vsyncpa [#allocation8], 1

</llo_original>
